<compile_context>
chip_gen: v7x
topology: tpu7x:2x2x1
jax: 0.10.0
libtpu: 0.0.40
codegen_flags: <defaults>
</compile_context>

<pallas_src>
import jax
import jax.numpy as jnp
from jax.experimental import pallas as pl
from jax.experimental.pallas import tpu as pltpu


def _round_up(x, m):
    return ((x + m - 1) // m) * m


def _sublane(dtype):
    # sublane granularity of the second-minor dim for a given dtype
    return max(8, 32 // jnp.dtype(dtype).itemsize)


def _maybe_single_buffered_spec(block_shape, index_map):
    """BlockSpec with single buffering (constant index_map => no need to
    double-buffer).  Falls back to a plain BlockSpec if this Pallas version
    does not accept pipeline_mode / Buffered(1)."""
    try:
        return pl.BlockSpec(block_shape, index_map,
                            pipeline_mode=pl.Buffered(1)), 1
    except (TypeError, AttributeError, ValueError):
        return pl.BlockSpec(block_shape, index_map), 2


def _make_resident_kernel(cast_to):
    # fn(x) = x @ W + b (wrapped Linear), then Rezero scale by scalar g.
    # W/bias are VMEM-resident; x/out are streamed along M.
    def kernel(g_ref, x_ref, w_ref, b_ref, o_ref):
        x = x_ref[...]
        if cast_to is not None:
            x = x.astype(cast_to)        # in-kernel cast: rides free VPU slots
        y = jnp.dot(x, w_ref[...], preferred_element_type=jnp.float32)
        y = y + b_ref[...]               # (1, N) bias broadcast over rows
        o_ref[...] = (y * g_ref[0]).astype(o_ref.dtype)
    return kernel


def _make_tiled_kernel(cast_to):
    # Large-H fallback: (M, N, K) grid with an f32 accumulator in VMEM.
    def kernel(g_ref, x_ref, w_ref, b_ref, o_ref, acc_ref):
        k = pl.program_id(2)

        @pl.when(k == 0)
        def _():
            acc_ref[...] = jnp.zeros_like(acc_ref)

        x = x_ref[...]
        if cast_to is not None:
            x = x.astype(cast_to)
        acc_ref[...] += jnp.dot(x, w_ref[...],
                                preferred_element_type=jnp.float32)

        @pl.when(k == pl.num_programs(2) - 1)
        def _():
            o_ref[...] = ((acc_ref[...] + b_ref[...]) * g_ref[0]).astype(o_ref.dtype)
    return kernel


def rezero_linear(x, w, b, g, *, compute_dtype=jnp.bfloat16,
                  _force_tiled=False, _tiles=None):
    """y = (x @ w + b) * g   ==   Rezero(nn.Linear)(x).

    x: [..., H_in];  w: [H_in, H_out] (transposed vs torch weight);
    b: [H_out];      g: [1] (the Rezero scalar, torch init zeros(1)).
    compute_dtype: MXU input dtype (default bf16; accumulation always f32;
                   output keeps x.dtype).  Pass None / x.dtype to disable.
    """
    orig_dtype = x.dtype
    *lead, h_in = x.shape
    h_in = int(h_in)
    h_out = int(w.shape[1])
    m = 1
    for d in lead:
        m *= int(d)

    x2d = x.reshape(m, h_in)

    # MXU input dtype.  x is cast INSIDE the kernel (no extra HBM pass);
    # W is resident / re-read many times, so cast it once here.
    cast_to = None
    if compute_dtype is not None and jnp.dtype(compute_dtype) != jnp.dtype(orig_dtype):
        cast_to = jnp.dtype(compute_dtype)
    w_c = w.astype(cast_to) if cast_to is not None else w
    b_f32 = b.astype(jnp.float32)
    g_f32 = g.astype(jnp.float32).reshape(1)

    x_item = jnp.dtype(x2d.dtype).itemsize
    w_item = jnp.dtype(w_c.dtype).itemsize
    out_item = jnp.dtype(orig_dtype).itemsize
    sub = max(_sublane(x2d.dtype), _sublane(orig_dtype))

    # N padded to a lane multiple only when needed (unmasked wide stores).
    # K is never padded: full-K blocks are legal under the (8,128) rule.
    n_blk = _round_up(h_out, 128)
    if n_blk != h_out:
        w_c = jnp.pad(w_c, ((0, 0), (0, n_blk - h_out)))
        b_f32 = jnp.pad(b_f32, (0, n_blk - h_out))
    b2d = b_f32.reshape(1, n_blk)

    # ---- hardware-aware VMEM budget ----
    try:
        vmem_cap = int(pltpu.get_tpu_info().vmem_capacity_bytes)
    except Exception:
        vmem_cap = 64 * 2**20            # conservative (v7x per-TensorCore)
    budget = int(vmem_cap * 0.70)        # ~45 MiB on v7x, ~90 MiB on v5e/v6e

    m_ceil = _round_up(m, sub)

    w_spec_sb, w_bufs = _maybe_single_buffered_spec((h_in, n_blk), lambda i: (0, 0))
    b_spec_sb, _ = _maybe_single_buffered_spec((1, n_blk), lambda i: (0, 0))

    fixed_bytes = w_bufs * h_in * n_blk * w_item + 2 * n_blk * 4
    min_need = fixed_bytes + 2 * sub * (h_in * x_item + n_blk * out_item)
    use_resident = (not _force_tiled) and (min_need <= budget)

    if use_resident:
        # ---- common path: 1-D M-streamed grid, W/bias resident ----
        tile_m = sub
        for tm in (2048, 1024, 512, 256, 128, 64, 32, 16, 8):
            if tm % sub != 0 or tm > m_ceil:
                continue
            if fixed_bytes + 2 * tm * (h_in * x_item + n_blk * out_item) <= budget:
                tile_m = tm
                break
        # Guarantee >=4 grid steps (pipelining + both v7x TCs) when M allows.
        if m_ceil >= 4 * sub:
            tile_m = min(tile_m, _round_up(pl.cdiv(m_ceil, 4), sub))
        if tile_m >= m:
            tile_m = m                    # one full block; avoids block > dim
        num_m = pl.cdiv(m, tile_m)

        need = fixed_bytes + 2 * tile_m * (h_in * x_item + n_blk * out_item)
        vmem_limit = int(min(max(2 * need, 32 * 2**20), vmem_cap - 2 * 2**20))

        cost = pl.CostEstimate(
            flops=2 * m * h_in * n_blk, transcendentals=0,
            bytes_accessed=int(m * h_in * x_item + h_in * n_blk * w_item
                               + n_blk * 4 + m * n_blk * out_item))

        def _call(single_buffer):
            if single_buffer:
                w_spec, b_spec = w_spec_sb, b_spec_sb
            else:
                w_spec = pl.BlockSpec((h_in, n_blk), lambda i: (0, 0))
                b_spec = pl.BlockSpec((1, n_blk), lambda i: (0, 0))
            return pl.pallas_call(
                _make_resident_kernel(cast_to),
                out_shape=jax.ShapeDtypeStruct((m, n_blk), orig_dtype),
                grid_spec=pltpu.PrefetchScalarGridSpec(
                    num_scalar_prefetch=0,
                    grid=(num_m,),
                    in_specs=[
                        pl.BlockSpec(memory_space=pltpu.SMEM),           # g
                        pl.BlockSpec((tile_m, h_in), lambda i: (i, 0)),  # x (streamed)
                        w_spec,                                          # W (resident)
                        b_spec,                                          # bias (resident)
                    ],
                    out_specs=pl.BlockSpec((tile_m, n_blk), lambda i: (i, 0)),
                ),
                compiler_params=pltpu.CompilerParams(
                    dimension_semantics=("parallel",),   # M shards across TCs on v7x
                    vmem_limit_bytes=vmem_limit,
                ),
                cost_estimate=cost,
            )(g_f32, x2d, w_c, b2d)

        if w_bufs == 1:
            try:
                out2d = _call(True)
            except Exception:
                out2d = _call(False)      # safety net if Buffered(1) won't lower
        else:
            out2d = _call(False)
    else:
        # ---- large-H fallback: resident W does not fit -> tile N and K ----
        if _tiles is not None:
            tile_m, tile_n, tile_k = _tiles
        else:
            tile_m = min(512, m_ceil)
            tile_n = min(512, n_blk)
            tile_k = 512 if h_in >= 512 else _round_up(h_in, 128)
        tile_m = max(sub, _round_up(min(tile_m, m_ceil), sub))
        if tile_m >= m:
            tile_m = m
        # Ragged K tiles would feed garbage into the accumulation, so K is
        # padded to a tile_k multiple (only in this rare large-H path).
        k_pad = _round_up(h_in, tile_k)
        x_t = x2d if k_pad == h_in else jnp.pad(x2d, ((0, 0), (0, k_pad - h_in)))
        w_t = w_c if k_pad == h_in else jnp.pad(w_c, ((0, k_pad - h_in), (0, 0)))

        num_m = pl.cdiv(m, tile_m)
        num_n = pl.cdiv(n_blk, tile_n)
        num_k = k_pad // tile_k

        need = (2 * tile_m * tile_k * x_item + 2 * tile_k * tile_n * w_item
                + 2 * tile_n * 4 + 2 * tile_m * tile_n * out_item
                + tile_m * tile_n * 4)
        vmem_limit = int(min(max(2 * need, 32 * 2**20), vmem_cap - 2 * 2**20))

        cost = pl.CostEstimate(
            flops=2 * m * k_pad * n_blk, transcendentals=0,
            bytes_accessed=int(num_n * m * k_pad * x_item
                               + num_m * k_pad * n_blk * w_item
                               + n_blk * 4 + m * n_blk * out_item))

        out2d = pl.pallas_call(
            _make_tiled_kernel(cast_to),
            out_shape=jax.ShapeDtypeStruct((m, n_blk), orig_dtype),
            grid_spec=pltpu.PrefetchScalarGridSpec(
                num_scalar_prefetch=0,
                grid=(num_m, num_n, num_k),
                in_specs=[
                    pl.BlockSpec(memory_space=pltpu.SMEM),                   # g
                    pl.BlockSpec((tile_m, tile_k), lambda i, j, k: (i, k)),  # x
                    pl.BlockSpec((tile_k, tile_n), lambda i, j, k: (k, j)),  # W
                    pl.BlockSpec((1, tile_n), lambda i, j, k: (0, j)),       # bias
                ],
                out_specs=pl.BlockSpec((tile_m, tile_n), lambda i, j, k: (i, j)),
                scratch_shapes=[pltpu.VMEM((tile_m, tile_n), jnp.float32)],
            ),
            compiler_params=pltpu.CompilerParams(
                dimension_semantics=("parallel", "parallel", "arbitrary"),
                vmem_limit_bytes=vmem_limit,
            ),
            cost_estimate=cost,
        )(g_f32, x_t, w_t, b2d)

    if n_blk != h_out:
        out2d = out2d[:, :h_out]
    return out2d.reshape(*lead, h_out)


if __name__ == "__main__":
    key = jax.random.PRNGKey(0)
    kx, kw, kb, kg, kx2, kx3, kw2, kb2 = jax.random.split(key, 8)

    # ---- main shape: Rezero(nn.Linear(H, H)) on (B, S, H) ----
    B, S, H = 2, 8, 32
    x = jax.random.normal(kx, (B, S, H), dtype=jnp.float32)
    w = jax.random.normal(kw, (H, H), dtype=jnp.float32) * (1.0 / jnp.sqrt(H))
    b = jax.random.normal(kb, (H,), dtype=jnp.float32) * 0.1
    g_nz = jax.random.normal(kg, (1,), dtype=jnp.float32)
    ref = (x @ w + b) * g_nz[0]

    # 1) exact-precision path (f32 on the MXU)
    y32 = rezero_linear(x, w, b, g_nz, compute_dtype=jnp.float32)
    jax.block_until_ready(y32)
    assert y32.shape == (B, S, H)
    assert jnp.allclose(y32, ref, atol=1e-4, rtol=1e-4), "f32 path mismatch"

    # 2) default bf16 MXU path (f32 accumulation) -- looser tolerance
    ybf = rezero_linear(x, w, b, g_nz)
    jax.block_until_ready(ybf)
    assert jnp.allclose(ybf, ref, atol=7e-2, rtol=5e-2), "bf16 path mismatch"

    # 3) torch init value g = zeros(1): Rezero output must be exactly 0
    y0 = rezero_linear(x, w, b, jnp.zeros((1,), jnp.float32))
    jax.block_until_ready(y0)
    assert jnp.all(y0 == 0.0), "g=0 must give exact zeros"

    # 4) ragged M (no wrapper-side padding of x along M anymore)
    xr = jax.random.normal(kx2, (3, 7, H), dtype=jnp.float32)
    yr = rezero_linear(xr, w, b, g_nz, compute_dtype=jnp.float32)
    jax.block_until_ready(yr)
    refr = (xr @ w + b) * g_nz[0]
    assert jnp.allclose(yr, refr, atol=1e-4, rtol=1e-4), "ragged-M mismatch"

    # 5) large-H fallback path ((M,N,K)-tiled grid + f32 accumulator), forced
    #    with tiny tiles so it is exercised at test size.
    Hk = 256
    xt = jax.random.normal(kx3, (2, 9, Hk), dtype=jnp.float32)
    wt = jax.random.normal(kw2, (Hk, Hk), dtype=jnp.float32) * (1.0 / jnp.sqrt(Hk))
    bt = jax.random.normal(kb2, (Hk,), dtype=jnp.float32) * 0.1
    yt = rezero_linear(xt, wt, bt, g_nz, compute_dtype=jnp.float32,
                       _force_tiled=True, _tiles=(8, 128, 128))
    jax.block_until_ready(yt)
    reft = (xt @ wt + bt) * g_nz[0]
    assert jnp.allclose(yt, reft, atol=1e-3, rtol=1e-3), "tiled fallback mismatch"

    print("KERNEL_OK")
</pallas_src>

<mosaic_0001>
module attributes {stable_mosaic.version = 11 : i64} {
  func.func @kernel(%arg0: i32, %arg1: memref<1xf32, #tpu.memory_space<smem>>, %arg2: memref<16x32xf32, #tpu.memory_space<vmem>>, %arg3: memref<32x128xf32, #tpu.memory_space<vmem>>, %arg4: memref<1x128xf32, #tpu.memory_space<vmem>>, %arg5: memref<16x128xf32, #tpu.memory_space<vmem>>) attributes {dimension_semantics = [#tpu.dimension_semantics<parallel>], iteration_bounds = array<i64: 1>, scalar_prefetch = 0 : i64, scratch_operands = 0 : i64, tpu.core_type = #tpu.core_type<tc>, window_params = [{transform_indices = @transform_0, window_bounds = array<i64: 1>}, {transform_indices = @transform_1, window_bounds = array<i64: 16, 32>}, {pipeline_mode = #tpu.pipeline_mode<synchronous>, transform_indices = @transform_2, window_bounds = array<i64: 32, 128>}, {pipeline_mode = #tpu.pipeline_mode<synchronous>, transform_indices = @transform_3, window_bounds = array<i64: 1, 128>}, {transform_indices = @transform_4, window_bounds = array<i64: 16, 128>}]} {
    %c0 = arith.constant 0 : index
    %c0_0 = arith.constant 0 : index
    %0 = vector.load %arg2[%c0, %c0_0] : memref<16x32xf32, #tpu.memory_space<vmem>>, vector<16x32xf32>
    %c0_1 = arith.constant 0 : index
    %c0_2 = arith.constant 0 : index
    %1 = vector.load %arg3[%c0_1, %c0_2] : memref<32x128xf32, #tpu.memory_space<vmem>>, vector<32x128xf32>
    %cst = arith.constant dense<0.000000e+00> : vector<16x128xf32>
    %2 = tpu.matmul %0, %1, %cst {dimension_numbers = #tpu.dot_dimension_numbers<[1], [0], [0], [1], [0, 0, 1, 1], [], []>} : vector<16x32xf32>, vector<32x128xf32>, vector<16x128xf32> -> vector<16x128xf32>
    %c0_3 = arith.constant 0 : index
    %c0_4 = arith.constant 0 : index
    %3 = vector.load %arg4[%c0_3, %c0_4] : memref<1x128xf32, #tpu.memory_space<vmem>>, vector<1x128xf32>
    %4 = vector.broadcast %3 : vector<1x128xf32> to vector<16x128xf32>
    %5 = arith.addf %2, %4 : vector<16x128xf32>
    %c0_5 = arith.constant 0 : index
    %6 = memref.load %arg1[%c0_5] : memref<1xf32, #tpu.memory_space<smem>>
    %7 = vector.broadcast %6 : f32 to vector<16x128xf32>
    %8 = arith.mulf %5, %7 : vector<16x128xf32>
    %c0_6 = arith.constant 0 : index
    %c0_7 = arith.constant 0 : index
    %9 = vector.load %arg5[%c0_6, %c0_7] : memref<16x128xf32, #tpu.memory_space<vmem>>, vector<16x128xf32>
    tpu.vector_store %arg5[%c0_6, %c0_7], %8 {strides = array<i32>} : memref<16x128xf32, #tpu.memory_space<vmem>>, vector<16x128xf32>,
    return
  }
  func.func @transform_0(%arg0: i32) -> i32 {
    %c0_i32 = arith.constant 0 : i32
    %c0_i32_0 = arith.constant 0 : i32
    return %c0_i32 : i32
  }
  func.func @transform_1(%arg0: i32) -> (i32, i32) {
    %c0_i32 = arith.constant 0 : i32
    %c0_i32_0 = arith.constant 0 : i32
    return %arg0, %c0_i32 : i32, i32
  }
  func.func @transform_2(%arg0: i32) -> (i32, i32) {
    %c0_i32 = arith.constant 0 : i32
    %c0_i32_0 = arith.constant 0 : i32
    %c0_i32_1 = arith.constant 0 : i32
    return %c0_i32, %c0_i32_0 : i32, i32
  }
  func.func @transform_3(%arg0: i32) -> (i32, i32) {
    %c0_i32 = arith.constant 0 : i32
    %c0_i32_0 = arith.constant 0 : i32
    %c0_i32_1 = arith.constant 0 : i32
    return %c0_i32, %c0_i32_0 : i32, i32
  }
  func.func @transform_4(%arg0: i32) -> (i32, i32) {
    %c0_i32 = arith.constant 0 : i32
    %c0_i32_0 = arith.constant 0 : i32
    return %arg0, %c0_i32 : i32, i32
  }
}

module attributes {stable_mosaic.version = 11 : i64} {
  func.func @kernel(%arg0: i32, %arg1: memref<1xf32, #tpu.memory_space<smem>>, %arg2: memref<16x32xf32, #tpu.memory_space<vmem>>, %arg3: memref<32x128xf32, #tpu.memory_space<vmem>>, %arg4: memref<1x128xf32, #tpu.memory_space<vmem>>, %arg5: memref<16x128xf32, #tpu.memory_space<vmem>>) attributes {dimension_semantics = [#tpu.dimension_semantics<parallel>], iteration_bounds = array<i64: 1>, scalar_prefetch = 0 : i64, scratch_operands = 0 : i64, tpu.core_type = #tpu.core_type<tc>, window_params = [{transform_indices = @transform_0, window_bounds = array<i64: 1>}, {transform_indices = @transform_1, window_bounds = array<i64: 16, 32>}, {pipeline_mode = #tpu.pipeline_mode<synchronous>, transform_indices = @transform_2, window_bounds = array<i64: 32, 128>}, {pipeline_mode = #tpu.pipeline_mode<synchronous>, transform_indices = @transform_3, window_bounds = array<i64: 1, 128>}, {transform_indices = @transform_4, window_bounds = array<i64: 16, 128>}]} {
    %c0 = arith.constant 0 : index
    %c0_0 = arith.constant 0 : index
    %0 = vector.load %arg2[%c0, %c0_0] : memref<16x32xf32, #tpu.memory_space<vmem>>, vector<16x32xf32>
    %c0_1 = arith.constant 0 : index
    %c0_2 = arith.constant 0 : index
    %1 = vector.load %arg3[%c0_1, %c0_2] : memref<32x128xf32, #tpu.memory_space<vmem>>, vector<32x128xf32>
    %cst = arith.constant dense<0.000000e+00> : vector<16x128xf32>
    %2 = tpu.matmul %0, %1, %cst {dimension_numbers = #tpu.dot_dimension_numbers<[1], [0], [0], [1], [0, 0, 1, 1], [], []>} : vector<16x32xf32>, vector<32x128xf32>, vector<16x128xf32> -> vector<16x128xf32>
    %c0_3 = arith.constant 0 : index
    %c0_4 = arith.constant 0 : index
    %3 = vector.load %arg4[%c0_3, %c0_4] : memref<1x128xf32, #tpu.memory_space<vmem>>, vector<1x128xf32>
    %4 = vector.broadcast %3 : vector<1x128xf32> to vector<16x128xf32>
    %5 = arith.addf %2, %4 : vector<16x128xf32>
    %c0_5 = arith.constant 0 : index
    %6 = memref.load %arg1[%c0_5] : memref<1xf32, #tpu.memory_space<smem>>
    %7 = vector.broadcast %6 : f32 to vector<16x128xf32>
    %8 = arith.mulf %5, %7 : vector<16x128xf32>
    %c0_6 = arith.constant 0 : index
    %c0_7 = arith.constant 0 : index
    %9 = vector.load %arg5[%c0_6, %c0_7] : memref<16x128xf32, #tpu.memory_space<vmem>>, vector<16x128xf32>
    tpu.vector_store %arg5[%c0_6, %c0_7], %8 {strides = array<i32>} : memref<16x128xf32, #tpu.memory_space<vmem>>, vector<16x128xf32>,
    return
  }
  func.func @transform_0(%arg0: i32) -> i32 {
    %c0_i32 = arith.constant 0 : i32
    %c0_i32_0 = arith.constant 0 : i32
    return %c0_i32 : i32
  }
  func.func @transform_1(%arg0: i32) -> (i32, i32) {
    %c0_i32 = arith.constant 0 : i32
    %c0_i32_0 = arith.constant 0 : i32
    return %arg0, %c0_i32 : i32, i32
  }
  func.func @transform_2(%arg0: i32) -> (i32, i32) {
    %c0_i32 = arith.constant 0 : i32
    %c0_i32_0 = arith.constant 0 : i32
    %c0_i32_1 = arith.constant 0 : i32
    return %c0_i32, %c0_i32_0 : i32, i32
  }
  func.func @transform_3(%arg0: i32) -> (i32, i32) {
    %c0_i32 = arith.constant 0 : i32
    %c0_i32_0 = arith.constant 0 : i32
    %c0_i32_1 = arith.constant 0 : i32
    return %c0_i32, %c0_i32_0 : i32, i32
  }
  func.func @transform_4(%arg0: i32) -> (i32, i32) {
    %c0_i32 = arith.constant 0 : i32
    %c0_i32_0 = arith.constant 0 : i32
    return %arg0, %c0_i32 : i32, i32
  }
}

</mosaic_0001>

<llo_original>
// kernel: tpu_custom_call.1
$region0: #{tpu_custom_call.1}
  #allocation0 [shape = 'u32[]', space=smem, size = 0x4, offset = 0x4, fixed_abs, tag = 'smem constant byte address 0x4 - core index']
  #allocation1 [shape = 'u32[144,128]{1,0:T(1,128)}', space=vmem, size = 0x12000, scoped, tag = 'internal scratch']
  #allocation2 [shape = 'f32[1]{0:T(128)S(6)}', space=smem, size = 0x200, scoped, tag = 'scoped memory for tpu_custom_call.1']
  %s0 = inlined_call_operand.<no memory space> [shape: f32[1], index: 0, kind: input, shape index: {}]
  %s1 = inlined_call_operand.hbm [shape: f32[16,32], index: 1, kind: input, shape index: {}]
  %s2 = inlined_call_operand.hbm [shape: f32[32,128], index: 2, kind: input, shape index: {}]
  %s3 = inlined_call_operand.vmem [shape: f32[1,128], index: 3, kind: input, shape index: {}]
  %s4 = inlined_call_operand.hbm [shape: f32[16,128], index: 4, kind: output, shape index: {}]
  %s5 = sld [smem:[#allocation0]]
  $region34: #{tpu_custom_call.1} parent=0
    _
  %s7 = ssub.s32 1, %s5
  %s8 = scalar_select 0, %s7, %s5
  %9 = sst [smem:[#allocation2]] %s0
  $region1: #{tpu_custom_call.1} parent=0
    #allocation3 [shape = 'u8[8192]{0}', space=vmem, size = 0x2000, scoped, tag = 'input window, operand 1, single buffered']
    #allocation4 [shape = 's32[1]{0}', space=sflag, size = 0x4, scoped, tag = 'scoped memory for tpu_custom_call.1']
    #allocation5 [shape = 's32[1]{0}', space=sflag, size = 0x4, scoped, tag = 'scoped memory for tpu_custom_call.1']
    #allocation6 [shape = 'u8[16384]{0}', space=vmem, size = 0x4000, scoped, tag = 'input window, operand 2, single buffered']
    #allocation7 [shape = 's32[1]{0}', space=sflag, size = 0x4, scoped, tag = 'scoped memory for tpu_custom_call.1']
    #allocation8 [shape = 'u8[8192]{0}', space=vmem, size = 0x2000, scoped, tag = 'output window, operand 0, single buffered']
    %10 = vsyncpa [#allocation4], 0
    %11 = vsyncpa [#allocation7], 0
    %12 = vsyncpa [#allocation5], 0
    // Predicated region
    $region2: #{tpu_custom_call.1} parent=1 // pred_check
      _
    $region3: #{tpu_custom_call.1} parent=1 // pred_check_branch
      %14 = sbr.rel (0) target = $region5
    $region4: #{tpu_custom_call.1} parent=1 // pred_region
      _
    $region5: #{tpu_custom_call.1} parent=1 // pred_fallthru
      _
    // Predicated region
    $region6: #{tpu_custom_call.1} parent=1 // pred_check
      _
    $region7: #{tpu_custom_call.1} parent=1 // pred_check_branch
      %16 = sbr.rel (0) target = $region9
    $region8: #{tpu_custom_call.1} parent=1 // pred_region
      %s18 = ssub.s32 256, 256
      %19 = vsyncadd [#allocation4], %s18
      %s20 = sshll.u32 [#allocation3], 4
      %s21 = int_to_ptr.vmem [resolvable:$true] %s20
      %26 = dma.hbm_to_vmem [thread:$0]  %s1, 256, %s21, [#allocation4], 128, 128, 8
    $region9: #{tpu_custom_call.1} parent=1 // pred_fallthru
      _
    // Predicated region
    $region10: #{tpu_custom_call.1} parent=1 // pred_check
      _
    $region11: #{tpu_custom_call.1} parent=1 // pred_check_branch
      %28 = sbr.rel (0) target = $region13
    $region12: #{tpu_custom_call.1} parent=1 // pred_region
      %s30 = ssub.s32 512, 512
      %31 = vsyncadd [#allocation7], %s30
      %s32 = sshll.u32 [#allocation6], 4
      %s33 = int_to_ptr.vmem [resolvable:$true] %s32
      %38 = dma.hbm_to_vmem [thread:$0]  %s2, 512, %s33, [#allocation7], 128, 128, 8
    $region13: #{tpu_custom_call.1} parent=1 // pred_fallthru
      _
    // Predicated region
    $region14: #{tpu_custom_call.1} parent=1 // pred_check
      _
    $region15: #{tpu_custom_call.1} parent=1 // pred_check_branch
      %40 = sbr.rel (0) target = $region17
    $region16: #{tpu_custom_call.1} parent=1 // pred_region
      _
    $region17: #{tpu_custom_call.1} parent=1 // pred_fallthru
      _
    // Predicated region
    $region18: #{tpu_custom_call.1} parent=1 // pred_check
      _
    $region19: #{tpu_custom_call.1} parent=1 // pred_check_branch
      %42 = sbr.rel (0) target = $region21
    $region20: #{tpu_custom_call.1} parent=1 // pred_region
      %43 = dma.done [#allocation4], 256
    $region21: #{tpu_custom_call.1} parent=1 // pred_fallthru
      _
    // Predicated region
    $region22: #{tpu_custom_call.1} parent=1 // pred_check
      _
    $region23: #{tpu_custom_call.1} parent=1 // pred_check_branch
      %45 = sbr.rel (0) target = $region25
    $region24: #{tpu_custom_call.1} parent=1 // pred_region
      %46 = dma.done [#allocation7], 512
    $region25: #{tpu_custom_call.1} parent=1 // pred_fallthru
      _
    %v47 = vld [vmem:[#allocation3] sm:$0xff]
    %v48 = vld [vmem:[#allocation3 + $0x8] sm:$0xff]
    %v49 = vld [vmem:[#allocation6] sm:$0xff]
    %v50 = vld [vmem:[#allocation6 + $0x8] sm:$0xff]
    %v51 = vld [vmem:[#allocation6 + $0x10] sm:$0xff]
    %v52 = vld [vmem:[#allocation6 + $0x18] sm:$0xff]
    %v53 = vld [vmem:[%s3] sm:$0x1]
    %v55 = vlaneseq
    %v56 = vshrl.u32 %v55, 7
    %v57 = vsub.s32 0, %v56
    %v58 = vrot.slane %v53, %v57
    %vm60 = vcmask 261120
    %v62 = vsel %vm60, %v47, 0
    %v65 = vsel %vm60, %v48, 0
    %67 = vmatprep.subr.mxu0 0.0
    %68 = vmatpush1.msra.mxu0 %v49
    %69 = vmatprep.subr.mxu0 0.0
    %70 = vmatpush1.msra.mxu0 %v50
    %71 = vmatprep.subr.mxu0 0.0
    %72 = vmatpush1.msra.mxu0 %v51
    %73 = vmatprep.subr.mxu0 0.0
    %74 = vmatpush1.msra.mxu0 %v52
    %75 = vmatprep.subr.mxu0 0.0
    %76 = vmatpush1.msra.mxu0 0.0
    %77 = vmatprep.subr.mxu0 0.0
    %78 = vmatpush1.msra.mxu0 0.0
    %79 = vmatprep.subr.mxu0 0.0
    %80 = vmatpush1.msra.mxu0 0.0
    %81 = vmatprep.subr.mxu0 0.0
    %82 = vmatpush1.msra.mxu0 0.0
    %83 = vmatprep.subr.mxu0 0.0
    %84 = vmatpush1.msra.mxu0 0.0
    %85 = vmatprep.subr.mxu0 0.0
    %86 = vmatpush1.msra.mxu0 0.0
    %87 = vmatprep.subr.mxu0 0.0
    %88 = vmatpush1.msra.mxu0 0.0
    %89 = vmatprep.subr.mxu0 0.0
    %90 = vmatpush1.msra.mxu0 0.0
    %91 = vmatprep.subr.mxu0 0.0
    %92 = vmatpush1.msra.mxu0 0.0
    %93 = vmatprep.subr.mxu0 0.0
    %94 = vmatpush1.msra.mxu0 0.0
    %95 = vmatprep.subr.mxu0 0.0
    %96 = vmatpush1.msra.mxu0 0.0
    %97 = vmatprep.subr.mxu0 0.0
    %98 = vmatpush1.msra.mxu0 0.0
    %99 = vmatprep.subr.mxu0 0.0
    %100 = vmatpush1.msra.mxu0 0.0
    %101 = vmatprep.subr.mxu0 0.0
    %102 = vmatpush1.msra.mxu0 0.0
    %103 = vmatprep.subr.mxu0 0.0
    %104 = vmatpush1.msra.mxu0 0.0
    %105 = vmatprep.subr.mxu0 0.0
    %106 = vmatpush1.msra.mxu0 0.0
    %107 = vmatprep.subr.mxu0 0.0
    %108 = vmatpush1.msra.mxu0 0.0
    %109 = vmatprep.subr.mxu0 0.0
    %110 = vmatpush1.msra.mxu0 0.0
    %111 = vmatprep.subr.mxu0 0.0
    %112 = vmatpush1.msra.mxu0 0.0
    %113 = vmatprep.subr.mxu0 0.0
    %114 = vmatpush1.msra.mxu0 0.0
    %115 = vmatprep.subr.mxu0 0.0
    %116 = vmatpush1.msra.mxu0 0.0
    %117 = vmatprep.subr.mxu0 0.0
    %118 = vmatpush1.msra.mxu0 0.0
    %119 = vmatprep.subr.mxu0 0.0
    %120 = vmatpush1.msra.mxu0 0.0
    %121 = vmatprep.subr.mxu0 0.0
    %122 = vmatpush1.msra.mxu0 0.0
    %123 = vmatprep.subr.mxu0 0.0
    %124 = vmatpush1.msra.mxu0 0.0
    %125 = vmatprep.subr.mxu0 0.0
    %126 = vmatpush1.msra.mxu0 0.0
    %127 = vmatprep.subr.mxu0 0.0
    %128 = vmatpush1.msra.mxu0 0.0
    %129 = vmatprep.subr.mxu0 0.0
    %130 = vmatpush1.msra.mxu0 0.0
    %131 = vmatprep.mubr.f32.mxu0 0.0
    %132 = vmatmul.mubr.f32.gmra.mrb[0].mxu0 %v62
    %v133 = vpop.f32.mrb[0].mxu0
    %v134 = vadd.f32 %v58, %v133
    %v135 = vpop.f32.mrb[0].mxu0
    %136 = vmatprep.mubr.f32.mxu0 0.0
    %137 = vmatmul.mubr.f32.gmra.mrb[0].mxu0 %v65
    %v138 = vpop.f32.mrb[0].mxu0
    %v139 = vadd.f32 %v58, %v138
    %v140 = vpop.f32.mrb[0].mxu0
    %141 = vdwg.mxu0
    %s142 = sld [smem:[#allocation2]]
    %v143 = vstv %s142
    %v144 = vmul.f32 %v134, %v143
    %v145 = vmul.f32 %v139, %v143
    %146 = vst [vmem:[#allocation8] sm:$0xff] %v144
    %147 = vst [vmem:[#allocation8 + $0x8] sm:$0xff] %v145
    // Predicated region
    $region26: #{tpu_custom_call.1} parent=1 // pred_check
      _
    $region27: #{tpu_custom_call.1} parent=1 // pred_check_branch
      %149 = sbr.rel (0) target = $region29
    $region28: #{tpu_custom_call.1} parent=1 // pred_region
      %s151 = ssub.s32 256, 256
      %152 = vsyncadd [#allocation5], %s151
      %s153 = sshll.u32 [#allocation8], 4
      %s154 = int_to_ptr.vmem [resolvable:$true] %s153
      %159 = dma.vmem_to_hbm [thread:$0]  %s154, 256, %s4, [#allocation5], 128, 128, 8
    $region29: #{tpu_custom_call.1} parent=1 // pred_fallthru
      _
    // Predicated region
    $region30: #{tpu_custom_call.1} parent=1 // pred_check
      _
    $region31: #{tpu_custom_call.1} parent=1 // pred_check_branch
      %161 = sbr.rel (0) target = $region33
    $region32: #{tpu_custom_call.1} parent=1 // pred_region
      %162 = dma.done [#allocation5], 256
    $region33: #{tpu_custom_call.1} parent=1 // pred_fallthru
      _
    %163 = vsyncpa [#allocation4], 1
    %164 = vsyncpa [#allocation7], 1
    %165 = vsyncpa [#allocation5], 1

// kernel: tpu_custom_call.1
$region0: #{tpu_custom_call.1}
  #allocation0 [shape = 'u32[]', space=smem, size = 0x4, offset = 0x4, fixed_abs, tag = 'smem constant byte address 0x4 - core index']
  #allocation1 [shape = 'u32[144,128]{1,0:T(1,128)}', space=vmem, size = 0x12000, scoped, tag = 'internal scratch']
  #allocation2 [shape = 'f32[1]{0:T(128)S(6)}', space=smem, size = 0x200, scoped, tag = 'scoped memory for tpu_custom_call.1']
  %s0 = inlined_call_operand.<no memory space> [shape: f32[1], index: 0, kind: input, shape index: {}]
  %s1 = inlined_call_operand.hbm [shape: f32[16,32], index: 1, kind: input, shape index: {}]
  %s2 = inlined_call_operand.hbm [shape: f32[32,128], index: 2, kind: input, shape index: {}]
  %s3 = inlined_call_operand.vmem [shape: f32[1,128], index: 3, kind: input, shape index: {}]
  %s4 = inlined_call_operand.hbm [shape: f32[16,128], index: 4, kind: output, shape index: {}]
  %s5 = sld [smem:[#allocation0]]
  $region34: #{tpu_custom_call.1} parent=0
    _
  %s7 = ssub.s32 1, %s5
  %s8 = scalar_select 0, %s7, %s5
  %9 = sst [smem:[#allocation2]] %s0
  $region1: #{tpu_custom_call.1} parent=0
    #allocation3 [shape = 'u8[8192]{0}', space=vmem, size = 0x2000, scoped, tag = 'input window, operand 1, single buffered']
    #allocation4 [shape = 's32[1]{0}', space=sflag, size = 0x4, scoped, tag = 'scoped memory for tpu_custom_call.1']
    #allocation5 [shape = 's32[1]{0}', space=sflag, size = 0x4, scoped, tag = 'scoped memory for tpu_custom_call.1']
    #allocation6 [shape = 'u8[16384]{0}', space=vmem, size = 0x4000, scoped, tag = 'input window, operand 2, single buffered']
    #allocation7 [shape = 's32[1]{0}', space=sflag, size = 0x4, scoped, tag = 'scoped memory for tpu_custom_call.1']
    #allocation8 [shape = 'u8[8192]{0}', space=vmem, size = 0x2000, scoped, tag = 'output window, operand 0, single buffered']
    %10 = vsyncpa [#allocation4], 0
    %11 = vsyncpa [#allocation7], 0
    %12 = vsyncpa [#allocation5], 0
    // Predicated region
    $region2: #{tpu_custom_call.1} parent=1 // pred_check
      _
    $region3: #{tpu_custom_call.1} parent=1 // pred_check_branch
      %14 = sbr.rel (0) target = $region5
    $region4: #{tpu_custom_call.1} parent=1 // pred_region
      _
    $region5: #{tpu_custom_call.1} parent=1 // pred_fallthru
      _
    // Predicated region
    $region6: #{tpu_custom_call.1} parent=1 // pred_check
      _
    $region7: #{tpu_custom_call.1} parent=1 // pred_check_branch
      %16 = sbr.rel (0) target = $region9
    $region8: #{tpu_custom_call.1} parent=1 // pred_region
      %s18 = ssub.s32 256, 256
      %19 = vsyncadd [#allocation4], %s18
      %s20 = sshll.u32 [#allocation3], 4
      %s21 = int_to_ptr.vmem [resolvable:$true] %s20
      %26 = dma.hbm_to_vmem [thread:$0]  %s1, 256, %s21, [#allocation4], 128, 128, 8
    $region9: #{tpu_custom_call.1} parent=1 // pred_fallthru
      _
    // Predicated region
    $region10: #{tpu_custom_call.1} parent=1 // pred_check
      _
    $region11: #{tpu_custom_call.1} parent=1 // pred_check_branch
      %28 = sbr.rel (0) target = $region13
    $region12: #{tpu_custom_call.1} parent=1 // pred_region
      %s30 = ssub.s32 512, 512
      %31 = vsyncadd [#allocation7], %s30
      %s32 = sshll.u32 [#allocation6], 4
      %s33 = int_to_ptr.vmem [resolvable:$true] %s32
      %38 = dma.hbm_to_vmem [thread:$0]  %s2, 512, %s33, [#allocation7], 128, 128, 8
    $region13: #{tpu_custom_call.1} parent=1 // pred_fallthru
      _
    // Predicated region
    $region14: #{tpu_custom_call.1} parent=1 // pred_check
      _
    $region15: #{tpu_custom_call.1} parent=1 // pred_check_branch
      %40 = sbr.rel (0) target = $region17
    $region16: #{tpu_custom_call.1} parent=1 // pred_region
      _
    $region17: #{tpu_custom_call.1} parent=1 // pred_fallthru
      _
    // Predicated region
    $region18: #{tpu_custom_call.1} parent=1 // pred_check
      _
    $region19: #{tpu_custom_call.1} parent=1 // pred_check_branch
      %42 = sbr.rel (0) target = $region21
    $region20: #{tpu_custom_call.1} parent=1 // pred_region
      %43 = dma.done [#allocation4], 256
    $region21: #{tpu_custom_call.1} parent=1 // pred_fallthru
      _
    // Predicated region
    $region22: #{tpu_custom_call.1} parent=1 // pred_check
      _
    $region23: #{tpu_custom_call.1} parent=1 // pred_check_branch
      %45 = sbr.rel (0) target = $region25
    $region24: #{tpu_custom_call.1} parent=1 // pred_region
      %46 = dma.done [#allocation7], 512
    $region25: #{tpu_custom_call.1} parent=1 // pred_fallthru
      _
    %v47 = vld [vmem:[#allocation3] sm:$0xff]
    %v48 = vld [vmem:[#allocation3 + $0x8] sm:$0xff]
    %v49 = vld [vmem:[#allocation6] sm:$0xff]
    %v50 = vld [vmem:[#allocation6 + $0x8] sm:$0xff]
    %v51 = vld [vmem:[#allocation6 + $0x10] sm:$0xff]
    %v52 = vld [vmem:[#allocation6 + $0x18] sm:$0xff]
    %v53 = vld [vmem:[%s3] sm:$0x1]
    %v55 = vlaneseq
    %v56 = vshrl.u32 %v55, 7
    %v57 = vsub.s32 0, %v56
    %v58 = vrot.slane %v53, %v57
    %vm60 = vcmask 261120
    %v62 = vsel %vm60, %v47, 0
    %v65 = vsel %vm60, %v48, 0
    %67 = vmatprep.subr.mxu0 0.0
    %68 = vmatpush1.msra.mxu0 %v49
    %69 = vmatprep.subr.mxu0 0.0
    %70 = vmatpush1.msra.mxu0 %v50
    %71 = vmatprep.subr.mxu0 0.0
    %72 = vmatpush1.msra.mxu0 %v51
    %73 = vmatprep.subr.mxu0 0.0
    %74 = vmatpush1.msra.mxu0 %v52
    %75 = vmatprep.subr.mxu0 0.0
    %76 = vmatpush1.msra.mxu0 0.0
    %77 = vmatprep.subr.mxu0 0.0
    %78 = vmatpush1.msra.mxu0 0.0
    %79 = vmatprep.subr.mxu0 0.0
    %80 = vmatpush1.msra.mxu0 0.0
    %81 = vmatprep.subr.mxu0 0.0
    %82 = vmatpush1.msra.mxu0 0.0
    %83 = vmatprep.subr.mxu0 0.0
    %84 = vmatpush1.msra.mxu0 0.0
    %85 = vmatprep.subr.mxu0 0.0
    %86 = vmatpush1.msra.mxu0 0.0
    %87 = vmatprep.subr.mxu0 0.0
    %88 = vmatpush1.msra.mxu0 0.0
    %89 = vmatprep.subr.mxu0 0.0
    %90 = vmatpush1.msra.mxu0 0.0
    %91 = vmatprep.subr.mxu0 0.0
    %92 = vmatpush1.msra.mxu0 0.0
    %93 = vmatprep.subr.mxu0 0.0
    %94 = vmatpush1.msra.mxu0 0.0
    %95 = vmatprep.subr.mxu0 0.0
    %96 = vmatpush1.msra.mxu0 0.0
    %97 = vmatprep.subr.mxu0 0.0
    %98 = vmatpush1.msra.mxu0 0.0
    %99 = vmatprep.subr.mxu0 0.0
    %100 = vmatpush1.msra.mxu0 0.0
    %101 = vmatprep.subr.mxu0 0.0
    %102 = vmatpush1.msra.mxu0 0.0
    %103 = vmatprep.subr.mxu0 0.0
    %104 = vmatpush1.msra.mxu0 0.0
    %105 = vmatprep.subr.mxu0 0.0
    %106 = vmatpush1.msra.mxu0 0.0
    %107 = vmatprep.subr.mxu0 0.0
    %108 = vmatpush1.msra.mxu0 0.0
    %109 = vmatprep.subr.mxu0 0.0
    %110 = vmatpush1.msra.mxu0 0.0
    %111 = vmatprep.subr.mxu0 0.0
    %112 = vmatpush1.msra.mxu0 0.0
    %113 = vmatprep.subr.mxu0 0.0
    %114 = vmatpush1.msra.mxu0 0.0
    %115 = vmatprep.subr.mxu0 0.0
    %116 = vmatpush1.msra.mxu0 0.0
    %117 = vmatprep.subr.mxu0 0.0
    %118 = vmatpush1.msra.mxu0 0.0
    %119 = vmatprep.subr.mxu0 0.0
    %120 = vmatpush1.msra.mxu0 0.0
    %121 = vmatprep.subr.mxu0 0.0
    %122 = vmatpush1.msra.mxu0 0.0
    %123 = vmatprep.subr.mxu0 0.0
    %124 = vmatpush1.msra.mxu0 0.0
    %125 = vmatprep.subr.mxu0 0.0
    %126 = vmatpush1.msra.mxu0 0.0
    %127 = vmatprep.subr.mxu0 0.0
    %128 = vmatpush1.msra.mxu0 0.0
    %129 = vmatprep.subr.mxu0 0.0
    %130 = vmatpush1.msra.mxu0 0.0
    %131 = vmatprep.mubr.f32.mxu0 0.0
    %132 = vmatmul.mubr.f32.gmra.mrb[0].mxu0 %v62
    %v133 = vpop.f32.mrb[0].mxu0
    %v134 = vadd.f32 %v58, %v133
    %v135 = vpop.f32.mrb[0].mxu0
    %136 = vmatprep.mubr.f32.mxu0 0.0
    %137 = vmatmul.mubr.f32.gmra.mrb[0].mxu0 %v65
    %v138 = vpop.f32.mrb[0].mxu0
    %v139 = vadd.f32 %v58, %v138
    %v140 = vpop.f32.mrb[0].mxu0
    %141 = vdwg.mxu0
    %s142 = sld [smem:[#allocation2]]
    %v143 = vstv %s142
    %v144 = vmul.f32 %v134, %v143
    %v145 = vmul.f32 %v139, %v143
    %146 = vst [vmem:[#allocation8] sm:$0xff] %v144
    %147 = vst [vmem:[#allocation8 + $0x8] sm:$0xff] %v145
    // Predicated region
    $region26: #{tpu_custom_call.1} parent=1 // pred_check
      _
    $region27: #{tpu_custom_call.1} parent=1 // pred_check_branch
      %149 = sbr.rel (0) target = $region29
    $region28: #{tpu_custom_call.1} parent=1 // pred_region
      %s151 = ssub.s32 256, 256
      %152 = vsyncadd [#allocation5], %s151
      %s153 = sshll.u32 [#allocation8], 4
      %s154 = int_to_ptr.vmem [resolvable:$true] %s153
      %159 = dma.vmem_to_hbm [thread:$0]  %s154, 256, %s4, [#allocation5], 128, 128, 8
    $region29: #{tpu_custom_call.1} parent=1 // pred_fallthru
      _
    // Predicated region
    $region30: #{tpu_custom_call.1} parent=1 // pred_check
      _
    $region31: #{tpu_custom_call.1} parent=1 // pred_check_branch
      %161 = sbr.rel (0) target = $region33
    $region32: #{tpu_custom_call.1} parent=1 // pred_region
      %162 = dma.done [#allocation5], 256
    $region33: #{tpu_custom_call.1} parent=1 // pred_fallthru
      _
    %163 = vsyncpa [#allocation4], 1
    %164 = vsyncpa [#allocation7], 1
    %165 = vsyncpa [#allocation5], 1

</llo_original>
